<compile_context>
chip_gen: v6e
topology: v6e:2x2x1
jax: 0.10.0
libtpu: 0.0.40
codegen_flags: <defaults>
</compile_context>

<pallas_src>
import math
import functools

import jax
import jax.numpy as jnp
from jax.experimental import pallas as pl
from jax.experimental.pallas import tpu as pltpu


# ----------------------------------------------------------------------------
# Buffer construction (mirrors the PyTorch __init__)
# ----------------------------------------------------------------------------
def make_positional_encoding(d_model: int, max_len: int = 500) -> jnp.ndarray:
    position = jnp.arange(0, max_len, dtype=jnp.float32)[:, None]            # (max_len, 1)
    div_term = jnp.exp(
        jnp.arange(0, d_model, 2, dtype=jnp.float32) * -(math.log(10000.0) / d_model)
    )                                                                        # (ceil(d/2),)
    angles = position * div_term                                             # (max_len, ceil(d/2))
    pe = jnp.zeros((max_len, d_model), dtype=jnp.float32)
    pe = pe.at[:, 0::2].set(jnp.sin(angles))
    cos_part = jnp.cos(angles[:, : (d_model // 2)]) if d_model % 2 else jnp.cos(angles)
    pe = pe.at[:, 1::2].set(cos_part)
    return pe                                                                # (max_len, d_model)


# ----------------------------------------------------------------------------
# Kernels (pure elementwise, mem-bound)
# ----------------------------------------------------------------------------
def _pe_add_kernel(x_ref, pe_ref, o_ref):
    # pe block is (1, TC); broadcasts over the row axis of the (TR, TC) x block.
    o_ref[...] = x_ref[...] + pe_ref[...]


def _pe_add_dropout_kernel(x_ref, pe_ref, m_ref, o_ref, *, inv_keep):
    # Inverted dropout: mask is {0,1}; the 1/(1-p) scale is fused here so the
    # wrapper does not make an extra pass over the mask array.
    o_ref[...] = (x_ref[...] + pe_ref[...]) * (m_ref[...] * inv_keep)


# ----------------------------------------------------------------------------
# Tiling heuristic
# ----------------------------------------------------------------------------
_LANE = 128
_SUBLANE = 8
_MAX_LANE_TILE = 4096                 # lane tile cap (elements)
_TARGET_BLOCK_BYTES = 2 * 1024 * 1024  # ~2 MiB per block keeps all gens happy


def _choose_tiles(rows: int, cols: int, bytes_per_elem: int):
    # Lane (last) axis: multiple of 128, or the full extent when that is impossible.
    if cols % _LANE == 0:
        tc = min(cols, _MAX_LANE_TILE)
    elif cols < _LANE:
        tc = cols                                   # full dim (always allowed)
    else:
        tc = min((cols // _LANE) * _LANE, _MAX_LANE_TILE)

    # Sublane (second-last) axis: multiple of 8, or the full extent if rows < 8,
    # sized so one block stays under the target byte budget.
    if rows <= _SUBLANE:
        tr = rows
    else:
        max_tr = max(_TARGET_BLOCK_BYTES // (tc * bytes_per_elem), _SUBLANE)
        tr = min((rows // _SUBLANE) * _SUBLANE, (max_tr // _SUBLANE) * _SUBLANE)
        tr = max(tr, _SUBLANE)
    return tr, tc


# ----------------------------------------------------------------------------
# Forward wrapper
# ----------------------------------------------------------------------------
def positional_encoding_forward(x, pe, *, p=0.1, training=False, rng=None,
                                donate_x=False):
    """x: (B, S, D);  pe: (max_len, D). Returns (B, S, D)."""
    B, S, D = x.shape
    pe_slice = pe[:S, :].astype(x.dtype)

    # Fold (S, D) into one lane-dense axis; pe broadcasts over the batch rows.
    cols = S * D
    x2 = x.reshape(B, cols)
    pe2 = pe_slice.reshape(1, cols)

    tr, tc = _choose_tiles(B, cols, jnp.dtype(x.dtype).itemsize)
    grid = (pl.cdiv(B, tr), pl.cdiv(cols, tc))

    x_spec = pl.BlockSpec((tr, tc), lambda i, j: (i, j))
    pe_spec = pl.BlockSpec((1, tc), lambda i, j: (0, j))
    out_spec = pl.BlockSpec((tr, tc), lambda i, j: (i, j))

    use_dropout = bool(training) and float(p) > 0.0
    if use_dropout:
        if rng is None:
            rng = jax.random.PRNGKey(0)
        # TODO(synk): on real TPU this could use the in-kernel hardware PRNG
        # (pltpu.prng_seed / prng_random_bits) to avoid streaming a mask from
        # HBM; it is generated host-side here so the kernel also lowers in
        # CPU interpret mode.
        keep = jax.random.bernoulli(rng, 1.0 - float(p), shape=(B, cols))
        mask = keep.astype(x.dtype)
        kernel = functools.partial(_pe_add_dropout_kernel,
                                   inv_keep=1.0 / (1.0 - float(p)))
        in_specs = [x_spec, pe_spec, pl.BlockSpec((tr, tc), lambda i, j: (i, j))]
        args = (x2, pe2, mask)
    else:
        kernel = _pe_add_kernel
        in_specs = [x_spec, pe_spec]
        args = (x2, pe2)

    out2 = pl.pallas_call(
        kernel,
        out_shape=jax.ShapeDtypeStruct((B, cols), x.dtype),
        grid_spec=pltpu.PrefetchScalarGridSpec(
            num_scalar_prefetch=0,
            grid=grid,
            in_specs=in_specs,
            out_specs=out_spec,
        ),
        compiler_params=pltpu.CompilerParams(
            dimension_semantics=("parallel", "parallel"),
            vmem_limit_bytes=32 * 1024 * 1024,
        ),
        input_output_aliases={0: 0} if donate_x else {},
    )(*args)

    return out2.reshape(B, S, D)


# ----------------------------------------------------------------------------
# Demo / correctness check
# ----------------------------------------------------------------------------
if __name__ == "__main__":
    B, S, D = 2, 8, 32           # small shapes consistent with the module
    max_len = 500
    dropout_p = 0.1

    key = jax.random.PRNGKey(0)
    kx, kd = jax.random.split(key)
    x = jax.random.normal(kx, (B, S, D), dtype=jnp.float32)

    pe = make_positional_encoding(D, max_len)

    # Eval-mode forward (dropout = identity), matches PyTorch module.eval()
    out = jax.block_until_ready(
        positional_encoding_forward(x, pe, p=dropout_p, training=False)
    )
    ref = x + pe[None, :S, :]
    assert jnp.allclose(out, ref, atol=1e-6), "mismatch vs reference (eval mode)"

    # Training-mode path (masked + 1/(1-p) scaled inside the kernel) also runs
    out_train = jax.block_until_ready(
        positional_encoding_forward(x, pe, p=dropout_p, training=True, rng=kd)
    )
    assert out_train.shape == (B, S, D)
    # Every surviving element must equal (x + pe) / (1 - p); dropped ones are 0.
    scaled_ref = ref / (1.0 - dropout_p)
    ok = jnp.logical_or(jnp.isclose(out_train, 0.0),
                        jnp.isclose(out_train, scaled_ref, atol=1e-5))
    assert bool(jnp.all(ok)), "mismatch vs reference (training mode)"

    print("KERNEL_OK")
</pallas_src>

<mosaic_0001>
module attributes {stable_mosaic.version = 11 : i64} {
  func.func @_pe_add_kernel(%arg0: i32, %arg1: i32, %arg2: memref<2x256xf32, #tpu.memory_space<vmem>>, %arg3: memref<1x256xf32, #tpu.memory_space<vmem>>, %arg4: memref<2x256xf32, #tpu.memory_space<vmem>>) attributes {dimension_semantics = [#tpu.dimension_semantics<parallel>, #tpu.dimension_semantics<parallel>], iteration_bounds = array<i64: 1, 1>, scalar_prefetch = 0 : i64, scratch_operands = 0 : i64, tpu.core_type = #tpu.core_type<tc>, window_params = [{transform_indices = @transform_0, window_bounds = array<i64: 2, 256>}, {transform_indices = @transform_1, window_bounds = array<i64: 1, 256>}, {transform_indices = @transform_2, window_bounds = array<i64: 2, 256>}]} {
    %c0 = arith.constant 0 : index
    %c0_0 = arith.constant 0 : index
    %0 = vector.load %arg2[%c0, %c0_0] : memref<2x256xf32, #tpu.memory_space<vmem>>, vector<2x256xf32>
    %c0_1 = arith.constant 0 : index
    %c0_2 = arith.constant 0 : index
    %1 = vector.load %arg3[%c0_1, %c0_2] : memref<1x256xf32, #tpu.memory_space<vmem>>, vector<1x256xf32>
    %2 = vector.broadcast %1 : vector<1x256xf32> to vector<2x256xf32>
    %3 = arith.addf %0, %2 : vector<2x256xf32>
    %c0_3 = arith.constant 0 : index
    %c0_4 = arith.constant 0 : index
    %4 = vector.load %arg4[%c0_3, %c0_4] : memref<2x256xf32, #tpu.memory_space<vmem>>, vector<2x256xf32>
    tpu.vector_store %arg4[%c0_3, %c0_4], %3 {strides = array<i32>} : memref<2x256xf32, #tpu.memory_space<vmem>>, vector<2x256xf32>,
    return
  }
  func.func @transform_0(%arg0: i32, %arg1: i32) -> (i32, i32) {
    %c0_i32 = arith.constant 0 : i32
    return %arg0, %arg1 : i32, i32
  }
  func.func @transform_1(%arg0: i32, %arg1: i32) -> (i32, i32) {
    %c0_i32 = arith.constant 0 : i32
    %c0_i32_0 = arith.constant 0 : i32
    return %c0_i32, %arg1 : i32, i32
  }
  func.func @transform_2(%arg0: i32, %arg1: i32) -> (i32, i32) {
    %c0_i32 = arith.constant 0 : i32
    return %arg0, %arg1 : i32, i32
  }
}

</mosaic_0001>

<llo_original>
// kernel: tpu_custom_call.1
$region0: #{tpu_custom_call.1}
  #allocation0 [shape = 'u32[]', space=smem, size = 0x4, offset = 0x4, fixed_abs, tag = 'smem constant byte address 0x4 - core index']
  #allocation1 [shape = 'u32[144,128]{1,0:T(1,128)}', space=vmem, size = 0x12000, scoped, tag = 'internal scratch']
  %s0 = inlined_call_operand.hbm [shape: f32[2,256], index: 0, kind: input, shape index: {}]
  %s1 = inlined_call_operand.hbm [shape: f32[1,256], index: 1, kind: input, shape index: {}]
  %s2 = inlined_call_operand.hbm [shape: f32[2,256], index: 2, kind: output, shape index: {}]
  %s3 = sld [smem:[#allocation0]]
  $region26: #{tpu_custom_call.1} parent=0
    _
  %s5 = ssub.s32 1, %s3
  %s6 = scalar_select 0, %s5, %s3
  $region1: #{tpu_custom_call.1} parent=0
    #allocation2 [shape = 'u8[2048]{0}', space=vmem, size = 0x800, scoped, tag = 'input window, operand 0, single buffered']
    #allocation3 [shape = 's32[1]{0}', space=sflag, size = 0x4, scoped, tag = 'scoped memory for tpu_custom_call.1']
    #allocation4 [shape = 's32[1]{0}', space=sflag, size = 0x4, scoped, tag = 'scoped memory for tpu_custom_call.1']
    #allocation5 [shape = 'u8[1024]{0}', space=vmem, size = 0x400, scoped, tag = 'input window, operand 1, single buffered']
    #allocation6 [shape = 's32[1]{0}', space=sflag, size = 0x4, scoped, tag = 'scoped memory for tpu_custom_call.1']
    #allocation7 [shape = 'u8[2048]{0}', space=vmem, size = 0x800, scoped, tag = 'output window, operand 0, single buffered']
    %7 = vsyncpa [#allocation3], 0
    %8 = vsyncpa [#allocation6], 0
    %9 = vsyncpa [#allocation4], 0
    // Predicated region
    $region2: #{tpu_custom_call.1} parent=1 // pred_check
      _
    $region3: #{tpu_custom_call.1} parent=1 // pred_check_branch
      %11 = sbr.rel (0) target = $region5
    $region4: #{tpu_custom_call.1} parent=1 // pred_region
      %s13 = ssub.s32 64, 64
      %14 = vsyncadd [#allocation3], %s13
      %s16 = sshll.u32 [#allocation2], 4
      %s17 = int_to_ptr.vmem [resolvable:$true] %s16
      %19 = dma.hbm_to_vmem [thread:$0]  %s0, 64, %s17, [#allocation3]
    $region5: #{tpu_custom_call.1} parent=1 // pred_fallthru
      _
    // Predicated region
    $region6: #{tpu_custom_call.1} parent=1 // pred_check
      _
    $region7: #{tpu_custom_call.1} parent=1 // pred_check_branch
      %21 = sbr.rel (0) target = $region9
    $region8: #{tpu_custom_call.1} parent=1 // pred_region
      %s23 = ssub.s32 32, 32
      %24 = vsyncadd [#allocation6], %s23
      %s26 = sshll.u32 [#allocation5], 4
      %s27 = int_to_ptr.vmem [resolvable:$true] %s26
      %29 = dma.hbm_to_vmem [thread:$0]  %s1, 32, %s27, [#allocation6]
    $region9: #{tpu_custom_call.1} parent=1 // pred_fallthru
      _
    // Predicated region
    $region10: #{tpu_custom_call.1} parent=1 // pred_check
      _
    $region11: #{tpu_custom_call.1} parent=1 // pred_check_branch
      %31 = sbr.rel (0) target = $region13
    $region12: #{tpu_custom_call.1} parent=1 // pred_region
      %32 = dma.done [#allocation3], 64
    $region13: #{tpu_custom_call.1} parent=1 // pred_fallthru
      _
    // Predicated region
    $region14: #{tpu_custom_call.1} parent=1 // pred_check
      _
    $region15: #{tpu_custom_call.1} parent=1 // pred_check_branch
      %34 = sbr.rel (0) target = $region17
    $region16: #{tpu_custom_call.1} parent=1 // pred_region
      %35 = dma.done [#allocation6], 32
    $region17: #{tpu_custom_call.1} parent=1 // pred_fallthru
      _
    %v36 = vld [vmem:[#allocation2] sm:$0xf]
    %v37 = vld [vmem:[#allocation5] sm:$0x3]
    %v39 = vlaneseq
    %v40 = vshrl.u32 %v39, 7
    %v41 = vsub.s32 0, %v40
    %v42 = vrot.slane %v37, %v41
    %v43 = vlaneseq
    %v44 = vshrl.u32 %v43, 7
    %v45 = vsub.s32 1, %v44
    %v46 = vrot.slane %v37, %v45
    %v47 = vcombine.low %v42, %v46
    %v49 = vunpack.c.l.s4 1983009808
    %v50 = vunpack.c.0.s8 %v49
    %v51 = vlaneseq
    %v52 = vshrl.u32 %v51, 7
    %v53 = vsub.s32 %v50, %v52
    %v54 = vrot.slane %v47, %v53
    %v56 = vadd.f32 %v36, %v54
    %57 = vst [vmem:[#allocation7] sm:$0xf] %v56
    // Predicated region
    $region18: #{tpu_custom_call.1} parent=1 // pred_check
      _
    $region19: #{tpu_custom_call.1} parent=1 // pred_check_branch
      %59 = sbr.rel (0) target = $region21
    $region20: #{tpu_custom_call.1} parent=1 // pred_region
      %s61 = ssub.s32 64, 64
      %62 = vsyncadd [#allocation4], %s61
      %s64 = sshll.u32 [#allocation7], 4
      %s65 = int_to_ptr.vmem [resolvable:$true] %s64
      %67 = dma.vmem_to_hbm [thread:$0]  %s65, 64, %s2, [#allocation4]
    $region21: #{tpu_custom_call.1} parent=1 // pred_fallthru
      _
    // Predicated region
    $region22: #{tpu_custom_call.1} parent=1 // pred_check
      _
    $region23: #{tpu_custom_call.1} parent=1 // pred_check_branch
      %69 = sbr.rel (0) target = $region25
    $region24: #{tpu_custom_call.1} parent=1 // pred_region
      %70 = dma.done [#allocation4], 64
    $region25: #{tpu_custom_call.1} parent=1 // pred_fallthru
      _
    %71 = vsyncpa [#allocation3], 1
    %72 = vsyncpa [#allocation6], 1
    %73 = vsyncpa [#allocation4], 1

</llo_original>
